<compile_context>
chip_gen: v5e
topology: v5e:2x2
jax: 0.10.0
libtpu: 0.0.40
codegen_flags: <defaults>
</compile_context>

<pallas_src>
import numpy as np
import jax
import jax.numpy as jnp
from jax.experimental import pallas as pl
from jax.experimental.pallas import tpu as pltpu


def _round_up(x, m):
    return (x + m - 1) // m * m


def egraphsage_kernel(src_ref, dst_ref, ef_ref, wt_ref, emb_ref, scores_ref):
    """One tile of edges (rows).

    emb_ref    <- [src | dst | ef]              (f32, lane-dense, exact copy)
    scores_ref <- [src | dst | ef] @ W.T        (f32 MXU dots, f32 accumulation)
    """
    de = src_ref.shape[1]
    df = ef_ref.shape[1]

    src = src_ref[...]
    dst = dst_ref[...]
    ef = ef_ref[...]

    # Fused "concatenate": 128-aligned slice stores straight into the output block.
    emb_ref[:, 0:de] = src
    emb_ref[:, de:2 * de] = dst
    emb_ref[:, 2 * de:2 * de + df] = ef

    # scores = [src|dst|ef] @ W.T  ==  src@Wt[0:de] + dst@Wt[de:2de] + ef@Wt[2de:]
    acc = jnp.dot(src, wt_ref[0:de, :], preferred_element_type=jnp.float32)
    acc += jnp.dot(dst, wt_ref[de:2 * de, :], preferred_element_type=jnp.float32)
    acc += jnp.dot(ef, wt_ref[2 * de:2 * de + df, :], preferred_element_type=jnp.float32)
    scores_ref[...] = acc


def prepare_classifier_weight(weight):
    """One-time parameter prep: W (C, K) -> W.T padded to (K, C_pad), C_pad lane-dense.

    Hoisted out of the forward so the transpose/pad is not a per-call XLA op.
    """
    C, K = weight.shape
    C_pad = _round_up(max(C, 128), 128)
    wt = jnp.zeros((K, C_pad), jnp.float32).at[:, :C].set(weight.T.astype(jnp.float32))
    return wt


def egraphsage_forward(src_emb, dst_emb, edge_feat, wt, num_classes, *, block_e=1024):
    """Residual=True EGraphSage forward.

    src_emb/dst_emb: (E, De) gathered node embeddings, edge_feat: (E, Df),
    wt: prepared (K, C_pad) = prepare_classifier_weight(weight).

    Returns (scores (E, C), edge_embeds (E, 2*De+Df)), matching
    (scores.t(), edge_embeds) of the PyTorch module.
    """
    E, De = src_emb.shape
    _, Df = edge_feat.shape
    K, C_pad = wt.shape
    assert K == 2 * De + Df
    assert De % 128 == 0 and Df % 128 == 0, "choose lane-dense (multiple of 128) dims"

    f32 = jnp.float32
    src_emb = src_emb.astype(f32)
    dst_emb = dst_emb.astype(f32)
    edge_feat = edge_feat.astype(f32)

    # Keep >= 2 grid steps for small batches (feeds both v7x TensorCores); for large E
    # this stays at the requested tile size (default 1024 ~ 7 MiB double-buffered).
    block_e = max(8, min(block_e, _round_up(pl.cdiv(E, 2), 8)))
    grid = (pl.cdiv(E, block_e),)

    cost = pl.CostEstimate(
        flops=2 * E * K * C_pad,
        transcendentals=0,
        bytes_accessed=(E * K * 4            # src/dst/ef inputs (K cols total)
                        + K * C_pad * 4      # resident weight slab
                        + E * K * 4          # edge_embeds out
                        + E * C_pad * 4),    # scores out
    )

    emb_out, scores = pl.pallas_call(
        egraphsage_kernel,
        out_shape=(jax.ShapeDtypeStruct((E, K), f32),
                   jax.ShapeDtypeStruct((E, C_pad), f32)),
        grid_spec=pltpu.PrefetchScalarGridSpec(
            num_scalar_prefetch=0,
            grid=grid,
            in_specs=[
                pl.BlockSpec((block_e, De), lambda i: (i, 0), memory_space=pltpu.VMEM),
                pl.BlockSpec((block_e, De), lambda i: (i, 0), memory_space=pltpu.VMEM),
                pl.BlockSpec((block_e, Df), lambda i: (i, 0), memory_space=pltpu.VMEM),
                pl.BlockSpec((K, C_pad), lambda i: (0, 0), memory_space=pltpu.VMEM),
            ],
            out_specs=(
                pl.BlockSpec((block_e, K), lambda i: (i, 0), memory_space=pltpu.VMEM),
                pl.BlockSpec((block_e, C_pad), lambda i: (i, 0), memory_space=pltpu.VMEM),
            ),
        ),
        compiler_params=pltpu.CompilerParams(dimension_semantics=("parallel",)),
        cost_estimate=cost,
    )(src_emb, dst_emb, edge_feat, wt)

    return scores[:, :num_classes], emb_out


if __name__ == "__main__":
    # ---- small, deterministic synthetic graph (lane-aligned feature dims) ----
    NUM_NODES = 32          # nodes in the graph
    NUM_EDGES_TOTAL = 256   # size of the edge-feature table / adjacency
    EMBED_DIM = 128         # enc.embed_dim
    EDGE_FEAT_DIM = 128     # edge_feat.shape[1]
    NUM_CLASSES = 8
    BATCH_EDGES = 64        # len(edges) passed to forward()

    key = jax.random.PRNGKey(0)
    k_adj, k_enc, k_ef, k_w, k_sel = jax.random.split(key, 5)

    # adjacency: adj[e] = (u, v) endpoint node names of edge e
    endpoints = np.asarray(jax.random.randint(k_adj, (NUM_EDGES_TOTAL, 2), 0, NUM_NODES))
    adj = {e: (int(endpoints[e, 0]), int(endpoints[e, 1])) for e in range(NUM_EDGES_TOTAL)}
    node_map = {n: n for n in range(NUM_NODES)}  # node name -> node id

    # TODO(synk): self.enc is a full GraphSAGE encoder sub-module; replaced here by a
    # deterministic embedding-table lookup with the same output shape/role.
    enc_table = jax.random.normal(k_enc, (NUM_NODES, EMBED_DIM), dtype=jnp.float32)
    edge_features = jax.random.normal(k_ef, (NUM_EDGES_TOTAL, EDGE_FEAT_DIM), dtype=jnp.float32)
    xavier_scale = float(np.sqrt(2.0 / (NUM_CLASSES + 2 * EMBED_DIM + EDGE_FEAT_DIM)))
    weight = xavier_scale * jax.random.normal(
        k_w, (NUM_CLASSES, 2 * EMBED_DIM + EDGE_FEAT_DIM), dtype=jnp.float32)

    # One-time parameter prep (hoisted out of forward / cacheable across calls).
    wt_prepared = prepare_classifier_weight(weight)

    # mini-batch of edges classified in forward()
    edges = [int(e) for e in np.asarray(
        jax.random.permutation(k_sel, NUM_EDGES_TOTAL))[:BATCH_EDGES]]

    # ---- host-side graph bookkeeping, exactly as in EGraphSage.forward ----
    nodes = [set(adj[e]) for e in edges]
    nodes = list(set.union(*nodes))
    nodes_id = [node_map[n] for n in nodes]
    unique_map = {nid: idx for idx, nid in enumerate(nodes_id)}
    node_embeds = enc_table[jnp.asarray(nodes_id, dtype=jnp.int32)]  # == enc(nodes_id).t()

    src_rows = jnp.asarray([unique_map[node_map[adj[e][0]]] for e in edges], jnp.int32)
    dst_rows = jnp.asarray([unique_map[node_map[adj[e][1]]] for e in edges], jnp.int32)
    ef_rows = jnp.asarray(edges, jnp.int32)

    # TODO(synk): these three row gathers could be fused into the kernel via scalar-prefetched
    # index vectors + pl.Element index_maps to save one (E, K) HBM round-trip; kept host-side
    # for now (only worth it at large E).
    src_emb = node_embeds[src_rows]        # (E, De)
    dst_emb = node_embeds[dst_rows]        # (E, De)
    edge_feat = edge_features[ef_rows]     # (E, Df)

    # ---- Pallas forward (residual=True path; residual=False just drops edge_feat) ----
    scores, edge_embeds = egraphsage_forward(src_emb, dst_emb, edge_feat,
                                             wt_prepared, NUM_CLASSES)
    scores = jax.block_until_ready(scores)
    edge_embeds = jax.block_until_ready(edge_embeds)

    # ---- plain-JAX f32 reference ----
    ref_embeds = jnp.concatenate([src_emb, dst_emb, edge_feat], axis=1)
    ref_scores = ref_embeds @ weight.T

    # edge_embeds is an exact f32 copy inside the kernel
    np.testing.assert_allclose(np.asarray(edge_embeds), np.asarray(ref_embeds),
                               rtol=1e-6, atol=1e-6)
    # f32 MXU operands / f32 accumulation (default TPU matmul precision) -> small tolerance
    np.testing.assert_allclose(np.asarray(scores), np.asarray(ref_scores),
                               rtol=2e-2, atol=2e-2)

    print("KERNEL_OK")
</pallas_src>

<mosaic_0001>
module attributes {stable_mosaic.version = 11 : i64} {
  func.func @egraphsage_kernel(%arg0: i32, %arg1: memref<32x128xf32, #tpu.memory_space<vmem>>, %arg2: memref<32x128xf32, #tpu.memory_space<vmem>>, %arg3: memref<32x128xf32, #tpu.memory_space<vmem>>, %arg4: memref<384x128xf32, #tpu.memory_space<vmem>>, %arg5: memref<32x384xf32, #tpu.memory_space<vmem>>, %arg6: memref<32x128xf32, #tpu.memory_space<vmem>>) attributes {dimension_semantics = [#tpu.dimension_semantics<parallel>], iteration_bounds = array<i64: 2>, scalar_prefetch = 0 : i64, scratch_operands = 0 : i64, tpu.core_type = #tpu.core_type<tc>, window_params = [{transform_indices = @transform_0, window_bounds = array<i64: 32, 128>}, {transform_indices = @transform_1, window_bounds = array<i64: 32, 128>}, {transform_indices = @transform_2, window_bounds = array<i64: 32, 128>}, {pipeline_mode = #tpu.pipeline_mode<synchronous>, transform_indices = @transform_3, window_bounds = array<i64: 384, 128>}, {transform_indices = @transform_4, window_bounds = array<i64: 32, 384>}, {transform_indices = @transform_5, window_bounds = array<i64: 32, 128>}]} {
    %c0 = arith.constant 0 : index
    %c0_0 = arith.constant 0 : index
    %0 = vector.load %arg1[%c0, %c0_0] : memref<32x128xf32, #tpu.memory_space<vmem>>, vector<32x128xf32>
    %c0_1 = arith.constant 0 : index
    %c0_2 = arith.constant 0 : index
    %1 = vector.load %arg2[%c0_1, %c0_2] : memref<32x128xf32, #tpu.memory_space<vmem>>, vector<32x128xf32>
    %c0_3 = arith.constant 0 : index
    %c0_4 = arith.constant 0 : index
    %2 = vector.load %arg3[%c0_3, %c0_4] : memref<32x128xf32, #tpu.memory_space<vmem>>, vector<32x128xf32>
    %c0_5 = arith.constant 0 : index
    %c0_6 = arith.constant 0 : index
    %3 = vector.load %arg5[%c0_5, %c0_6] : memref<32x384xf32, #tpu.memory_space<vmem>>, vector<32x128xf32>
    tpu.vector_store %arg5[%c0_5, %c0_6], %0 {strides = array<i32>} : memref<32x384xf32, #tpu.memory_space<vmem>>, vector<32x128xf32>,
    %c0_7 = arith.constant 0 : index
    %c128 = arith.constant 128 : index
    %4 = vector.load %arg5[%c0_7, %c128] : memref<32x384xf32, #tpu.memory_space<vmem>>, vector<32x128xf32>
    tpu.vector_store %arg5[%c0_7, %c128], %1 {strides = array<i32>} : memref<32x384xf32, #tpu.memory_space<vmem>>, vector<32x128xf32>,
    %c0_8 = arith.constant 0 : index
    %c256 = arith.constant 256 : index
    %5 = vector.load %arg5[%c0_8, %c256] : memref<32x384xf32, #tpu.memory_space<vmem>>, vector<32x128xf32>
    tpu.vector_store %arg5[%c0_8, %c256], %2 {strides = array<i32>} : memref<32x384xf32, #tpu.memory_space<vmem>>, vector<32x128xf32>,
    %c0_9 = arith.constant 0 : index
    %c0_10 = arith.constant 0 : index
    %6 = vector.load %arg4[%c0_9, %c0_10] : memref<384x128xf32, #tpu.memory_space<vmem>>, vector<128x128xf32>
    %cst = arith.constant dense<0.000000e+00> : vector<32x128xf32>
    %7 = tpu.matmul %0, %6, %cst {dimension_numbers = #tpu.dot_dimension_numbers<[1], [0], [0], [1], [0, 0, 1, 1], [], []>} : vector<32x128xf32>, vector<128x128xf32>, vector<32x128xf32> -> vector<32x128xf32>
    %c128_11 = arith.constant 128 : index
    %c0_12 = arith.constant 0 : index
    %8 = vector.load %arg4[%c128_11, %c0_12] : memref<384x128xf32, #tpu.memory_space<vmem>>, vector<128x128xf32>
    %cst_13 = arith.constant dense<0.000000e+00> : vector<32x128xf32>
    %9 = tpu.matmul %1, %8, %cst_13 {dimension_numbers = #tpu.dot_dimension_numbers<[1], [0], [0], [1], [0, 0, 1, 1], [], []>} : vector<32x128xf32>, vector<128x128xf32>, vector<32x128xf32> -> vector<32x128xf32>
    %10 = arith.addf %7, %9 : vector<32x128xf32>
    %c256_14 = arith.constant 256 : index
    %c0_15 = arith.constant 0 : index
    %11 = vector.load %arg4[%c256_14, %c0_15] : memref<384x128xf32, #tpu.memory_space<vmem>>, vector<128x128xf32>
    %cst_16 = arith.constant dense<0.000000e+00> : vector<32x128xf32>
    %12 = tpu.matmul %2, %11, %cst_16 {dimension_numbers = #tpu.dot_dimension_numbers<[1], [0], [0], [1], [0, 0, 1, 1], [], []>} : vector<32x128xf32>, vector<128x128xf32>, vector<32x128xf32> -> vector<32x128xf32>
    %13 = arith.addf %10, %12 : vector<32x128xf32>
    %c0_17 = arith.constant 0 : index
    %c0_18 = arith.constant 0 : index
    %14 = vector.load %arg6[%c0_17, %c0_18] : memref<32x128xf32, #tpu.memory_space<vmem>>, vector<32x128xf32>
    tpu.vector_store %arg6[%c0_17, %c0_18], %13 {strides = array<i32>} : memref<32x128xf32, #tpu.memory_space<vmem>>, vector<32x128xf32>,
    return
  }
  func.func @transform_0(%arg0: i32) -> (i32, i32) {
    %c0_i32 = arith.constant 0 : i32
    %c0_i32_0 = arith.constant 0 : i32
    return %arg0, %c0_i32 : i32, i32
  }
  func.func @transform_1(%arg0: i32) -> (i32, i32) {
    %c0_i32 = arith.constant 0 : i32
    %c0_i32_0 = arith.constant 0 : i32
    return %arg0, %c0_i32 : i32, i32
  }
  func.func @transform_2(%arg0: i32) -> (i32, i32) {
    %c0_i32 = arith.constant 0 : i32
    %c0_i32_0 = arith.constant 0 : i32
    return %arg0, %c0_i32 : i32, i32
  }
  func.func @transform_3(%arg0: i32) -> (i32, i32) {
    %c0_i32 = arith.constant 0 : i32
    %c0_i32_0 = arith.constant 0 : i32
    %c0_i32_1 = arith.constant 0 : i32
    return %c0_i32, %c0_i32_0 : i32, i32
  }
  func.func @transform_4(%arg0: i32) -> (i32, i32) {
    %c0_i32 = arith.constant 0 : i32
    %c0_i32_0 = arith.constant 0 : i32
    return %arg0, %c0_i32 : i32, i32
  }
  func.func @transform_5(%arg0: i32) -> (i32, i32) {
    %c0_i32 = arith.constant 0 : i32
    %c0_i32_0 = arith.constant 0 : i32
    return %arg0, %c0_i32 : i32, i32
  }
}

</mosaic_0001>

<llo_original>
// kernel: tpu_custom_call.1
$region0: #{tpu_custom_call.1}
  #allocation0 [shape = 'u32[]', space=smem, size = 0x4, offset = 0x4, fixed_abs, tag = 'smem constant byte address 0x4 - core index']
  #allocation1 [shape = 'u32[72,128]{1,0:T(1,128)}', space=vmem, size = 0x9000, scoped, tag = 'internal scratch']
  %s0 = inlined_call_operand.hbm [shape: f32[64,128], index: 0, kind: input, shape index: {}]
  %s1 = inlined_call_operand.hbm [shape: f32[64,128], index: 1, kind: input, shape index: {}]
  %s2 = inlined_call_operand.hbm [shape: f32[64,128], index: 2, kind: input, shape index: {}]
  %s3 = inlined_call_operand.hbm [shape: f32[384,128], index: 3, kind: input, shape index: {}]
  %s4 = inlined_call_operand.hbm [shape: f32[64,384], index: 4, kind: output, shape index: {0}]
  %s5 = inlined_call_operand.hbm [shape: f32[64,128], index: 5, kind: output, shape index: {1}]
  %6 = xla_tuple %s4, %s5
  %s7 = sld [smem:[#allocation0]]
  $region73: #{tpu_custom_call.1} parent=0
    _
  %s9 = ssub.s32 1, %s7
  %s10 = scalar_select 0, %s9, %s7
  $region1: #{tpu_custom_call.1} parent=0
    #allocation2 [shape = 'u8[32768]{0}', space=vmem, size = 0x8000, scoped, tag = 'input window, operand 0']
    #allocation3 [shape = 's32[2]{0}', space=sflag, size = 0x8, scoped, tag = 'scoped memory for tpu_custom_call.1']
    #allocation4 [shape = 's32[2]{0}', space=sflag, size = 0x8, scoped, tag = 'scoped memory for tpu_custom_call.1']
    #allocation5 [shape = 'u8[32768]{0}', space=vmem, size = 0x8000, scoped, tag = 'input window, operand 1']
    #allocation6 [shape = 's32[2]{0}', space=sflag, size = 0x8, scoped, tag = 'scoped memory for tpu_custom_call.1']
    #allocation7 [shape = 'u8[32768]{0}', space=vmem, size = 0x8000, scoped, tag = 'input window, operand 2']
    #allocation8 [shape = 'u8[196608]{0}', space=vmem, size = 0x30000, scoped, tag = 'input window, operand 3, single buffered']
    #allocation9 [shape = 's32[1]{0}', space=sflag, size = 0x4, scoped, tag = 'scoped memory for tpu_custom_call.1']
    #allocation10 [shape = 'u8[98304]{0}', space=vmem, size = 0x18000, scoped, tag = 'output window, operand 0']
    #allocation11 [shape = 'u8[32768]{0}', space=vmem, size = 0x8000, scoped, tag = 'output window, operand 1']
    #allocation12 [shape = 's32[2]{0}', space=sflag, size = 0x8, scoped, tag = 'scoped memory for tpu_custom_call.1']
    %11 = vsyncpa [#allocation3], 0
    %s12 = scalar_lea.sflag [#allocation3], 1
    %13 = vsyncpa %s12, 0
    %14 = vsyncpa [#allocation6], 0
    %s15 = scalar_lea.sflag [#allocation6], 1
    %16 = vsyncpa %s15, 0
    %17 = vsyncpa [#allocation9], 0
    %18 = vsyncpa [#allocation4], 0
    %s19 = scalar_lea.sflag [#allocation4], 1
    %20 = vsyncpa %s19, 0
    %21 = vsyncpa [#allocation12], 0
    %s22 = scalar_lea.sflag [#allocation12], 1
    %23 = vsyncpa %s22, 0
    loop: start=0, step=1, limit=4
    $region2: #{tpu_custom_call.1} parent=1 // loop_pre_header
      _
    $region3: #{tpu_custom_call.1} parent=1 // loop_header
      %s25 = sphi 0, %s29
      %p26 = scmp.ge.s32.totalorder %s25, 4
      %s35 = sphi 0, %s37
      %s38 = sphi 0, %s35
      %s39 = sphi 0, %s38
      %s55 = sphi 0, %s39
      %s61 = sphi 0, %s63
      %s64 = sphi 0, %s61
      %s65 = sphi 0, %s64
      %s81 = sphi 0, %s65
      %s87 = sphi 0, %s89
      %s90 = sphi 0, %s87
      %s91 = sphi 0, %s90
      %s107 = sphi 0, %s91
      %s111 = sphi 0, %s111
      %s113 = sphi 0, %s111
      %s114 = sphi 0, %s113
      %s128 = sphi 0, %s114
      %s134 = sphi 0, %s136
      %s137 = sphi 0, %s134
      %s138 = sphi 0, %s137
      %s154 = sphi 0, %s138
      %s160 = sphi 0, %s162
      %s163 = sphi 0, %s160
      %s164 = sphi 0, %s163
      %s180 = sphi 0, %s164
    $region4: #{tpu_custom_call.1} parent=1 // loop_header_branch
      %28 = sbr.rel (%p26) target = $region8
    $region5: #{tpu_custom_call.1} parent=1 // loop_body
      %s30 = ssub.s32 %s25, 1
      %s31 = ssub.s32 %s25, 2
      %s32 = sadd.s32 %s25, 1
      %s33 = ssub.s32 %s25, %s32
      %p34 = scmp.eq.s32.totalorder %s33, 0
      %s36 = sadd.s32 %s35, 1
      %s37 = scalar_select %p34, %s35, %s36
      %p40 = pneg %p34
      %p41 = scmp.eq.s32.totalorder %s25, 1
      %p42 = por %p40, %p41
      %p43 = scmp.ne.s32.totalorder %s35, %s38
      %p44 = scmp.eq.s32.totalorder %s25, 0
      %p45 = por %p43, %p44
      %p46 = scmp.ne.s32.totalorder %s35, %s38
      %p47 = scmp.eq.s32.totalorder %s30, 1
      %p48 = por %p46, %p47
      %p49 = scmp.ne.s32.totalorder %s38, %s39
      %p50 = scmp.eq.s32.totalorder %s30, 0
      %p51 = por %p49, %p50
      %p52 = scmp.ne.s32.totalorder %s38, %s39
      %p53 = scmp.eq.s32.totalorder %s31, 1
      %p54 = por %p52, %p53
      %p56 = scmp.ne.s32.totalorder %s39, %s55
      %p57 = scmp.eq.s32.totalorder %s31, 0
      %p58 = por %p56, %p57
      %s59 = ssub.s32 %s25, %s32
      %p60 = scmp.eq.s32.totalorder %s59, 0
      %s62 = sadd.s32 %s61, 1
      %s63 = scalar_select %p60, %s61, %s62
      %p66 = pneg %p60
      %p67 = scmp.eq.s32.totalorder %s25, 1
      %p68 = por %p66, %p67
      %p69 = scmp.ne.s32.totalorder %s61, %s64
      %p70 = scmp.eq.s32.totalorder %s25, 0
      %p71 = por %p69, %p70
      %p72 = scmp.ne.s32.totalorder %s61, %s64
      %p73 = scmp.eq.s32.totalorder %s30, 1
      %p74 = por %p72, %p73
      %p75 = scmp.ne.s32.totalorder %s64, %s65
      %p76 = scmp.eq.s32.totalorder %s30, 0
      %p77 = por %p75, %p76
      %p78 = scmp.ne.s32.totalorder %s64, %s65
      %p79 = scmp.eq.s32.totalorder %s31, 1
      %p80 = por %p78, %p79
      %p82 = scmp.ne.s32.totalorder %s65, %s81
      %p83 = scmp.eq.s32.totalorder %s31, 0
      %p84 = por %p82, %p83
      %s85 = ssub.s32 %s25, %s32
      %p86 = scmp.eq.s32.totalorder %s85, 0
      %s88 = sadd.s32 %s87, 1
      %s89 = scalar_select %p86, %s87, %s88
      %p92 = pneg %p86
      %p93 = scmp.eq.s32.totalorder %s25, 1
      %p94 = por %p92, %p93
      %p95 = scmp.ne.s32.totalorder %s87, %s90
      %p96 = scmp.eq.s32.totalorder %s25, 0
      %p97 = por %p95, %p96
      %p98 = scmp.ne.s32.totalorder %s87, %s90
      %p99 = scmp.eq.s32.totalorder %s30, 1
      %p100 = por %p98, %p99
      %p101 = scmp.ne.s32.totalorder %s90, %s91
      %p102 = scmp.eq.s32.totalorder %s30, 0
      %p103 = por %p101, %p102
      %p104 = scmp.ne.s32.totalorder %s90, %s91
      %p105 = scmp.eq.s32.totalorder %s31, 1
      %p106 = por %p104, %p105
      %p108 = scmp.ne.s32.totalorder %s91, %s107
      %p109 = scmp.eq.s32.totalorder %s31, 0
      %p110 = por %p108, %p109
      %s112 = sadd.s32 %s111, 1
      %p115 = scmp.eq.s32.totalorder %s25, 1
      %p116 = scmp.ne.s32.totalorder %s111, %s113
      %p117 = scmp.eq.s32.totalorder %s25, 0
      %p118 = por %p116, %p117
      %p119 = scmp.ne.s32.totalorder %s111, %s113
      %p120 = scmp.eq.s32.totalorder %s30, 1
      %p121 = por %p119, %p120
      %p122 = scmp.ne.s32.totalorder %s113, %s114
      %p123 = scmp.eq.s32.totalorder %s30, 0
      %p124 = por %p122, %p123
      %p125 = scmp.ne.s32.totalorder %s113, %s114
      %p126 = scmp.eq.s32.totalorder %s31, 1
      %p127 = por %p125, %p126
      %p129 = scmp.ne.s32.totalorder %s114, %s128
      %p130 = scmp.eq.s32.totalorder %s31, 0
      %p131 = por %p129, %p130
      %s132 = ssub.s32 %s25, %s32
      %p133 = scmp.eq.s32.totalorder %s132, 0
      %s135 = sadd.s32 %s134, 1
      %s136 = scalar_select %p133, %s134, %s135
      %p139 = pneg %p133
      %p140 = scmp.eq.s32.totalorder %s25, 1
      %p141 = por %p139, %p140
      %p142 = scmp.ne.s32.totalorder %s134, %s137
      %p143 = scmp.eq.s32.totalorder %s25, 0
      %p144 = por %p142, %p143
      %p145 = scmp.ne.s32.totalorder %s134, %s137
      %p146 = scmp.eq.s32.totalorder %s30, 1
      %p147 = por %p145, %p146
      %p148 = scmp.ne.s32.totalorder %s137, %s138
      %p149 = scmp.eq.s32.totalorder %s30, 0
      %p150 = por %p148, %p149
      %p151 = scmp.ne.s32.totalorder %s137, %s138
      %p152 = scmp.eq.s32.totalorder %s31, 1
      %p153 = por %p151, %p152
      %p155 = scmp.ne.s32.totalorder %s138, %s154
      %p156 = scmp.eq.s32.totalorder %s31, 0
      %p157 = por %p155, %p156
      %s158 = ssub.s32 %s25, %s32
      %p159 = scmp.eq.s32.totalorder %s158, 0
      %s161 = sadd.s32 %s160, 1
      %s162 = scalar_select %p159, %s160, %s161
      %p165 = pneg %p159
      %p166 = scmp.eq.s32.totalorder %s25, 1
      %p167 = por %p165, %p166
      %p168 = scmp.ne.s32.totalorder %s160, %s163
      %p169 = scmp.eq.s32.totalorder %s25, 0
      %p170 = por %p168, %p169
      %p171 = scmp.ne.s32.totalorder %s160, %s163
      %p172 = scmp.eq.s32.totalorder %s30, 1
      %p173 = por %p171, %p172
      %p174 = scmp.ne.s32.totalorder %s163, %s164
      %p175 = scmp.eq.s32.totalorder %s30, 0
      %p176 = por %p174, %p175
      %p177 = scmp.ne.s32.totalorder %s163, %s164
      %p178 = scmp.eq.s32.totalorder %s31, 1
      %p179 = por %p177, %p178
      %p181 = scmp.ne.s32.totalorder %s164, %s180
      %p182 = scmp.eq.s32.totalorder %s31, 0
      %p183 = por %p181, %p182
      %p184 = scmp.le.s32.totalorder 1, %s25
      %p185 = scmp.lt.s32.totalorder %s25, 3
      %p186 = pnand %p184, %p185
      %p187 = pneg %p186
      // Predicated region
      $region9: #{tpu_custom_call.1} parent=5 // pred_check
        _
      $region10: #{tpu_custom_call.1} parent=5 // pred_check_branch
        %189 = sbr.rel (%p186) target = $region12
      $region11: #{tpu_custom_call.1} parent=5 // pred_region
        %s190 = ssub.s32 %s25, 1
        // Predicated region
        $region13: #{tpu_custom_call.1} parent=11 // pred_check
          %p191 = pneg %p124
        $region14: #{tpu_custom_call.1} parent=11 // pred_check_branch
          %193 = sbr.rel (%p191) target = $region16
        $region15: #{tpu_custom_call.1} parent=11 // pred_region
          %195 = vsyncadd [#allocation9], 0
          %s196 = sshll.u32 %s3, 4
          %s197 = int_to_ptr.hbm [resolvable:$true] %s196
          %s198 = sshll.u32 [#allocation8], 4
          %s199 = int_to_ptr.vmem [resolvable:$true] %s198
          %204 = dma.hbm_to_vmem [thread:$0]  %s197, 6144, %s199, [#allocation9], 128, 128, 8
        $region16: #{tpu_custom_call.1} parent=11 // pred_fallthru
          _
      $region12: #{tpu_custom_call.1} parent=5 // pred_fallthru
        _
      %p205 = scmp.lt.s32.totalorder %s25, 2
      // Predicated region
      $region17: #{tpu_custom_call.1} parent=5 // pred_check
        %p206 = pneg %p205
      $region18: #{tpu_custom_call.1} parent=5 // pred_check_branch
        %208 = sbr.rel (%p206) target = $region20
      $region19: #{tpu_custom_call.1} parent=5 // pred_region
        // Predicated region
        $region21: #{tpu_custom_call.1} parent=19 // pred_check
          %p209 = pneg %p45
        $region22: #{tpu_custom_call.1} parent=19 // pred_check_branch
          %211 = sbr.rel (%p209) target = $region24
        $region23: #{tpu_custom_call.1} parent=19 // pred_region
          %s212 = sand.u32 %s35, 1
          %s213 = scalar_lea.sflag [#allocation3], %s212
          %s214 = sand.u32 %s35, 1
          %s215 = smul.addr %s214, 32
          %s216 = scalar_lea.vmem [#allocation2], %s215
          %s217 = smul.u32 4, %s25
          %219 = vsyncadd %s213, 0
          %s220 = smul.addr %s217, 8
          %s221 = scalar_lea.hbm %s0, %s220
          %s222 = sshll.u32 %s221, 4
          %s223 = int_to_ptr.hbm [resolvable:$true] %s222
          %s224 = sshll.u32 %s216, 4
          %s225 = int_to_ptr.vmem [resolvable:$true] %s224
          %230 = dma.hbm_to_vmem [thread:$0]  %s223, 512, %s225, %s213, 128, 128, 8
        $region24: #{tpu_custom_call.1} parent=19 // pred_fallthru
          _
        // Predicated region
        $region25: #{tpu_custom_call.1} parent=19 // pred_check
          %p231 = pneg %p71
        $region26: #{tpu_custom_call.1} parent=19 // pred_check_branch
          %233 = sbr.rel (%p231) target = $region28
        $region27: #{tpu_custom_call.1} parent=19 // pred_region
          %s234 = sand.u32 %s25, 1
          %s235 = scalar_lea.sflag [#allocation6], %s234
          %s236 = sand.u32 %s61, 1
          %s237 = smul.addr %s236, 32
          %s238 = scalar_lea.vmem [#allocation5], %s237
          %s239 = smul.u32 4, %s25
          %241 = vsyncadd %s235, 0
          %s242 = smul.addr %s239, 8
          %s243 = scalar_lea.hbm %s1, %s242
          %s244 = sshll.u32 %s243, 4
          %s245 = int_to_ptr.hbm [resolvable:$true] %s244
          %s246 = sshll.u32 %s238, 4
          %s247 = int_to_ptr.vmem [resolvable:$true] %s246
          %252 = dma.hbm_to_vmem [thread:$0]  %s245, 512, %s247, %s235, 128, 128, 8
        $region28: #{tpu_custom_call.1} parent=19 // pred_fallthru
          _
        // Predicated region
        $region29: #{tpu_custom_call.1} parent=19 // pred_check
          %p253 = pneg %p97
        $region30: #{tpu_custom_call.1} parent=19 // pred_check_branch
          %255 = sbr.rel (%p253) target = $region32
        $region31: #{tpu_custom_call.1} parent=19 // pred_region
          %s256 = sand.u32 %s25, 1
          %s257 = scalar_lea.sflag [#allocation6], %s256
          %s258 = sand.u32 %s87, 1
          %s259 = smul.addr %s258, 32
          %s260 = scalar_lea.vmem [#allocation7], %s259
          %s261 = smul.u32 4, %s25
          %263 = vsyncadd %s257, 0
          %s264 = smul.addr %s261, 8
          %s265 = scalar_lea.hbm %s2, %s264
          %s266 = sshll.u32 %s265, 4
          %s267 = int_to_ptr.hbm [resolvable:$true] %s266
          %s268 = sshll.u32 %s260, 4
          %s269 = int_to_ptr.vmem [resolvable:$true] %s268
          %274 = dma.hbm_to_vmem [thread:$0]  %s267, 512, %s269, %s257, 128, 128, 8
        $region32: #{tpu_custom_call.1} parent=19 // pred_fallthru
          _
      $region20: #{tpu_custom_call.1} parent=5 // pred_fallthru
        _
      %p275 = scmp.le.s32.totalorder 1, %s25
      %p276 = scmp.lt.s32.totalorder %s25, 3
      %p277 = pnand %p275, %p276
      %p278 = pneg %p277
      // Predicated region
      $region33: #{tpu_custom_call.1} parent=5 // pred_check
        _
      $region34: #{tpu_custom_call.1} parent=5 // pred_check_branch
        %280 = sbr.rel (%p277) target = $region36
      $region35: #{tpu_custom_call.1} parent=5 // pred_region
        %s281 = ssub.s32 %s25, 1
        %s282 = sand.u32 %s38, 1
        %s283 = scalar_lea.sflag [#allocation3], %s282
        %s284 = sand.u32 %s38, 1
        %s285 = smul.addr %s284, 32
        %s286 = scalar_lea.vmem [#allocation2], %s285
        // Predicated region
        $region37: #{tpu_custom_call.1} parent=35 // pred_check
          %p287 = pneg %p51
        $region38: #{tpu_custom_call.1} parent=35 // pred_check_branch
          %289 = sbr.rel (%p287) target = $region40
        $region39: #{tpu_custom_call.1} parent=35 // pred_region
          %291 = dma.done %s283, 512
        $region40: #{tpu_custom_call.1} parent=35 // pred_fallthru
          _
        %s292 = sand.u32 %s30, 1
        %s293 = scalar_lea.sflag [#allocation6], %s292
        %s294 = sand.u32 %s64, 1
        %s295 = smul.addr %s294, 32
        %s296 = scalar_lea.vmem [#allocation5], %s295
        // Predicated region
        $region41: #{tpu_custom_call.1} parent=35 // pred_check
          %p297 = pneg %p77
        $region42: #{tpu_custom_call.1} parent=35 // pred_check_branch
          %299 = sbr.rel (%p297) target = $region44
        $region43: #{tpu_custom_call.1} parent=35 // pred_region
          %301 = dma.done %s293, 512
        $region44: #{tpu_custom_call.1} parent=35 // pred_fallthru
          _
        %s302 = sand.u32 %s30, 1
        %s303 = scalar_lea.sflag [#allocation6], %s302
        %s304 = sand.u32 %s90, 1
        %s305 = smul.addr %s304, 32
        %s306 = scalar_lea.vmem [#allocation7], %s305
        // Predicated region
        $region45: #{tpu_custom_call.1} parent=35 // pred_check
          %p307 = pneg %p103
        $region46: #{tpu_custom_call.1} parent=35 // pred_check_branch
          %309 = sbr.rel (%p307) target = $region48
        $region47: #{tpu_custom_call.1} parent=35 // pred_region
          %311 = dma.done %s303, 512
        $region48: #{tpu_custom_call.1} parent=35 // pred_fallthru
          _
        // Predicated region
        $region49: #{tpu_custom_call.1} parent=35 // pred_check
          %p312 = pneg %p124
        $region50: #{tpu_custom_call.1} parent=35 // pred_check_branch
          %314 = sbr.rel (%p312) target = $region52
        $region51: #{tpu_custom_call.1} parent=35 // pred_region
          %316 = dma.done [#allocation9], 6144
        $region52: #{tpu_custom_call.1} parent=35 // pred_fallthru
          _
        %s317 = sand.u32 %s38, 1
        %s318 = scalar_lea.sflag [#allocation3], %s317
        %s319 = sand.u32 %s38, 1
        %s320 = smul.addr %s319, 32
        %s321 = scalar_lea.vmem [#allocation2], %s320
        %p322 = pneg %p51
        %p323 = pneg %p48
        %s324 = sand.u32 %s30, 1
        %s325 = scalar_lea.sflag [#allocation6], %s324
        %s326 = sand.u32 %s64, 1
        %s327 = smul.addr %s326, 32
        %s328 = scalar_lea.vmem [#allocation5], %s327
        %p329 = pneg %p77
        %p330 = pneg %p74
        %s331 = sand.u32 %s30, 1
        %s332 = scalar_lea.sflag [#allocation6], %s331
        %s333 = sand.u32 %s90, 1
        %s334 = smul.addr %s333, 32
        %s335 = scalar_lea.vmem [#allocation7], %s334
        %p336 = pneg %p103
        %p337 = pneg %p100
        %p338 = pneg %p124
        %p339 = pneg %p121
        %p340 = pneg %p150
        %p341 = pneg %p147
        %s342 = sand.u32 %s137, 1
        %s343 = scalar_lea.sflag [#allocation4], %s342
        %s344 = sand.u32 %s137, 1
        %s345 = smul.addr %s344, 96
        %s346 = scalar_lea.vmem [#allocation10], %s345
        %p347 = pneg %p176
        %p348 = pneg %p173
        %s349 = sand.u32 %s163, 1
        %s350 = scalar_lea.sflag [#allocation12], %s349
        %s351 = sand.u32 %s163, 1
        %s352 = smul.addr %s351, 32
        %s353 = scalar_lea.vmem [#allocation11], %s352
        %s354 = smul.u32 4, %s30
        %s355 = smul.u32 4, %s30
        %s356 = smul.u32 4, %s30
        %s357 = smul.u32 4, %s30
        %s358 = smul.u32 4, %s30
        %v359 = vld [vmem:[%s286] sm:$0xff]
        %v360 = vld [vmem:[%s286 + $0x8] sm:$0xff]
        %v361 = vld [vmem:[%s286 + $0x10] sm:$0xff]
        %v362 = vld [vmem:[%s286 + $0x18] sm:$0xff]
        %v363 = vld [vmem:[%s296] sm:$0xff]
        %v364 = vld [vmem:[%s296 + $0x8] sm:$0xff]
        %v365 = vld [vmem:[%s296 + $0x10] sm:$0xff]
        %v366 = vld [vmem:[%s296 + $0x18] sm:$0xff]
        %v367 = vld [vmem:[%s306] sm:$0xff]
        %v368 = vld [vmem:[%s306 + $0x8] sm:$0xff]
        %v369 = vld [vmem:[%s306 + $0x10] sm:$0xff]
        %v370 = vld [vmem:[%s306 + $0x18] sm:$0xff]
        %371 = vst [vmem:[%s346] sm:$0xff] %v359
        %372 = vst [vmem:[%s346 + $0x18] sm:$0xff] %v360
        %373 = vst [vmem:[%s346 + $0x30] sm:$0xff] %v361
        %374 = vst [vmem:[%s346 + $0x48] sm:$0xff] %v362
        %375 = vst [vmem:[%s346 + $0x8] sm:$0xff] %v363
        %376 = vst [vmem:[%s346 + $0x20] sm:$0xff] %v364
        %377 = vst [vmem:[%s346 + $0x38] sm:$0xff] %v365
        %378 = vst [vmem:[%s346 + $0x50] sm:$0xff] %v366
        %379 = vst [vmem:[%s346 + $0x10] sm:$0xff] %v367
        %380 = vst [vmem:[%s346 + $0x28] sm:$0xff] %v368
        %381 = vst [vmem:[%s346 + $0x40] sm:$0xff] %v369
        %382 = vst [vmem:[%s346 + $0x58] sm:$0xff] %v370
        %v383 = vld [vmem:[#allocation8] sm:$0xff]
        %v384 = vld [vmem:[#allocation8 + $0x8] sm:$0xff]
        %v385 = vld [vmem:[#allocation8 + $0x10] sm:$0xff]
        %v386 = vld [vmem:[#allocation8 + $0x18] sm:$0xff]
        %v387 = vld [vmem:[#allocation8 + $0x20] sm:$0xff]
        %v388 = vld [vmem:[#allocation8 + $0x28] sm:$0xff]
        %v389 = vld [vmem:[#allocation8 + $0x30] sm:$0xff]
        %v390 = vld [vmem:[#allocation8 + $0x38] sm:$0xff]
        %v391 = vld [vmem:[#allocation8 + $0x40] sm:$0xff]
        %v392 = vld [vmem:[#allocation8 + $0x48] sm:$0xff]
        %v393 = vld [vmem:[#allocation8 + $0x50] sm:$0xff]
        %v394 = vld [vmem:[#allocation8 + $0x58] sm:$0xff]
        %v395 = vld [vmem:[#allocation8 + $0x60] sm:$0xff]
        %v396 = vld [vmem:[#allocation8 + $0x68] sm:$0xff]
        %v397 = vld [vmem:[#allocation8 + $0x70] sm:$0xff]
        %v398 = vld [vmem:[#allocation8 + $0x78] sm:$0xff]
        %v399 = vld [vmem:[#allocation8 + $0x80] sm:$0xff]
        %v400 = vld [vmem:[#allocation8 + $0x88] sm:$0xff]
        %v401 = vld [vmem:[#allocation8 + $0x90] sm:$0xff]
        %v402 = vld [vmem:[#allocation8 + $0x98] sm:$0xff]
        %v403 = vld [vmem:[#allocation8 + $0xa0] sm:$0xff]
        %v404 = vld [vmem:[#allocation8 + $0xa8] sm:$0xff]
        %v405 = vld [vmem:[#allocation8 + $0xb0] sm:$0xff]
        %v406 = vld [vmem:[#allocation8 + $0xb8] sm:$0xff]
        %v407 = vld [vmem:[#allocation8 + $0xc0] sm:$0xff]
        %v408 = vld [vmem:[#allocation8 + $0xc8] sm:$0xff]
        %v409 = vld [vmem:[#allocation8 + $0xd0] sm:$0xff]
        %v410 = vld [vmem:[#allocation8 + $0xd8] sm:$0xff]
        %v411 = vld [vmem:[#allocation8 + $0xe0] sm:$0xff]
        %v412 = vld [vmem:[#allocation8 + $0xe8] sm:$0xff]
        %v413 = vld [vmem:[#allocation8 + $0xf0] sm:$0xff]
        %v414 = vld [vmem:[#allocation8 + $0xf8] sm:$0xff]
        %415 = vmatpush.msra.mxu0 %v414
        %416 = vmatpush.msra.mxu0 %v413
        %417 = vmatpush.msra.mxu0 %v412
        %418 = vmatpush.msra.mxu0 %v411
        %419 = vmatpush.msra.mxu0 %v410
        %420 = vmatpush.msra.mxu0 %v409
        %421 = vmatpush.msra.mxu0 %v408
        %422 = vmatpush.msra.mxu0 %v407
        %423 = vmatpush.msra.mxu0 %v406
        %424 = vmatpush.msra.mxu0 %v405
        %425 = vmatpush.msra.mxu0 %v404
        %426 = vmatpush.msra.mxu0 %v403
        %427 = vmatpush.msra.mxu0 %v402
        %428 = vmatpush.msra.mxu0 %v401
        %429 = vmatpush.msra.mxu0 %v400
        %430 = vmatpush.msra.mxu0 %v399
        %431 = vmatmul.f32.gmra.mxu0 %v363
        %v432 = vpop.f32.mrf.mxu0
        %v433 = vadd.f32 0.0, %v432
        %434 = vmatmul.f32.gmra.mxu0 %v364
        %v435 = vpop.f32.mrf.mxu0
        %v436 = vadd.f32 0.0, %v435
        %437 = vmatmul.f32.gmra.mxu0 %v365
        %v438 = vpop.f32.mrf.mxu0
        %v439 = vadd.f32 0.0, %v438
        %440 = vmatmul.f32.gmra.mxu0 %v366
        %v441 = vpop.f32.mrf.mxu0
        %v442 = vadd.f32 0.0, %v441
        %443 = vdwg.mxu0
        %444 = vmatpush.msra.mxu0 %v398
        %445 = vmatpush.msra.mxu0 %v397
        %446 = vmatpush.msra.mxu0 %v396
        %447 = vmatpush.msra.mxu0 %v395
        %448 = vmatpush.msra.mxu0 %v394
        %449 = vmatpush.msra.mxu0 %v393
        %450 = vmatpush.msra.mxu0 %v392
        %451 = vmatpush.msra.mxu0 %v391
        %452 = vmatpush.msra.mxu0 %v390
        %453 = vmatpush.msra.mxu0 %v389
        %454 = vmatpush.msra.mxu0 %v388
        %455 = vmatpush.msra.mxu0 %v387
        %456 = vmatpush.msra.mxu0 %v386
        %457 = vmatpush.msra.mxu0 %v385
        %458 = vmatpush.msra.mxu0 %v384
        %459 = vmatpush.msra.mxu0 %v383
        %460 = vmatmul.f32.gmra.mxu0 %v359
        %v461 = vpop.f32.mrf.mxu0
        %v462 = vadd.f32 %v433, %v461
        %463 = vmatmul.f32.gmra.mxu0 %v360
        %v464 = vpop.f32.mrf.mxu0
        %v465 = vadd.f32 %v436, %v464
        %466 = vmatmul.f32.gmra.mxu0 %v361
        %v467 = vpop.f32.mrf.mxu0
        %v468 = vadd.f32 %v439, %v467
        %469 = vmatmul.f32.gmra.mxu0 %v362
        %v470 = vpop.f32.mrf.mxu0
        %v471 = vadd.f32 %v442, %v470
        %472 = vdwg.mxu0
        %v473 = vld [vmem:[#allocation8 + $0x100] sm:$0xff]
        %v474 = vld [vmem:[#allocation8 + $0x108] sm:$0xff]
        %v475 = vld [vmem:[#allocation8 + $0x110] sm:$0xff]
        %v476 = vld [vmem:[#allocation8 + $0x118] sm:$0xff]
        %v477 = vld [vmem:[#allocation8 + $0x120] sm:$0xff]
        %v478 = vld [vmem:[#allocation8 + $0x128] sm:$0xff]
        %v479 = vld [vmem:[#allocation8 + $0x130] sm:$0xff]
        %v480 = vld [vmem:[#allocation8 + $0x138] sm:$0xff]
        %v481 = vld [vmem:[#allocation8 + $0x140] sm:$0xff]
        %v482 = vld [vmem:[#allocation8 + $0x148] sm:$0xff]
        %v483 = vld [vmem:[#allocation8 + $0x150] sm:$0xff]
        %v484 = vld [vmem:[#allocation8 + $0x158] sm:$0xff]
        %v485 = vld [vmem:[#allocation8 + $0x160] sm:$0xff]
        %v486 = vld [vmem:[#allocation8 + $0x168] sm:$0xff]
        %v487 = vld [vmem:[#allocation8 + $0x170] sm:$0xff]
        %v488 = vld [vmem:[#allocation8 + $0x178] sm:$0xff]
        %489 = vmatpush.msra.mxu0 %v488
        %490 = vmatpush.msra.mxu0 %v487
        %491 = vmatpush.msra.mxu0 %v486
        %492 = vmatpush.msra.mxu0 %v485
        %493 = vmatpush.msra.mxu0 %v484
        %494 = vmatpush.msra.mxu0 %v483
        %495 = vmatpush.msra.mxu0 %v482
        %496 = vmatpush.msra.mxu0 %v481
        %497 = vmatpush.msra.mxu0 %v480
        %498 = vmatpush.msra.mxu0 %v479
        %499 = vmatpush.msra.mxu0 %v478
        %500 = vmatpush.msra.mxu0 %v477
        %501 = vmatpush.msra.mxu0 %v476
        %502 = vmatpush.msra.mxu0 %v475
        %503 = vmatpush.msra.mxu0 %v474
        %504 = vmatpush.msra.mxu0 %v473
        %505 = vmatmul.f32.gmra.mxu0 %v367
        %v506 = vpop.f32.mrf.mxu0
        %v507 = vadd.f32 0.0, %v506
        %508 = vmatmul.f32.gmra.mxu0 %v368
        %v509 = vpop.f32.mrf.mxu0
        %v510 = vadd.f32 0.0, %v509
        %511 = vmatmul.f32.gmra.mxu0 %v369
        %v512 = vpop.f32.mrf.mxu0
        %v513 = vadd.f32 0.0, %v512
        %514 = vmatmul.f32.gmra.mxu0 %v370
        %v515 = vpop.f32.mrf.mxu0
        %v516 = vadd.f32 0.0, %v515
        %517 = vdwg.mxu0
        %v518 = vadd.f32 %v462, %v507
        %v519 = vadd.f32 %v465, %v510
        %v520 = vadd.f32 %v468, %v513
        %v521 = vadd.f32 %v471, %v516
        %522 = vst [vmem:[%s353] sm:$0xff] %v518
        %523 = vst [vmem:[%s353 + $0x8] sm:$0xff] %v519
        %524 = vst [vmem:[%s353 + $0x10] sm:$0xff] %v520
        %525 = vst [vmem:[%s353 + $0x18] sm:$0xff] %v521
        %s526 = sand.u32 %s137, 1
        %s527 = scalar_lea.sflag [#allocation4], %s526
        %s528 = sand.u32 %s137, 1
        %s529 = smul.addr %s528, 96
        %s530 = scalar_lea.vmem [#allocation10], %s529
        %s531 = sand.u32 %s163, 1
        %s532 = scalar_lea.sflag [#allocation12], %s531
        %s533 = sand.u32 %s163, 1
        %s534 = smul.addr %s533, 32
        %s535 = scalar_lea.vmem [#allocation11], %s534
        // Predicated region
        $region53: #{tpu_custom_call.1} parent=35 // pred_check
          %p536 = pneg %p147
        $region54: #{tpu_custom_call.1} parent=35 // pred_check_branch
          %538 = sbr.rel (%p536) target = $region56
        $region55: #{tpu_custom_call.1} parent=35 // pred_region
          %s539 = smul.u32 4, %s30
          %541 = vsyncadd %s527, 0
          %s542 = smul.addr %s539, 3
          %s543 = smul.addr %s542, 8
          %s544 = scalar_lea.hbm %s4, %s543
          %s545 = sshll.u32 %s530, 4
          %s546 = int_to_ptr.vmem [resolvable:$true] %s545
          %s547 = sshll.u32 %s544, 4
          %s548 = int_to_ptr.hbm [resolvable:$true] %s547
          %553 = dma.vmem_to_hbm [thread:$0]  %s546, 1536, %s548, %s527, 384, 384, 24
        $region56: #{tpu_custom_call.1} parent=35 // pred_fallthru
          _
        // Predicated region
        $region57: #{tpu_custom_call.1} parent=35 // pred_check
          %p554 = pneg %p173
        $region58: #{tpu_custom_call.1} parent=35 // pred_check_branch
          %556 = sbr.rel (%p554) target = $region60
        $region59: #{tpu_custom_call.1} parent=35 // pred_region
          %s557 = smul.u32 4, %s30
          %559 = vsyncadd %s532, 0
          %s560 = smul.addr %s557, 8
          %s561 = scalar_lea.hbm %s5, %s560
          %s562 = sshll.u32 %s535, 4
          %s563 = int_to_ptr.vmem [resolvable:$true] %s562
          %s564 = sshll.u32 %s561, 4
          %s565 = int_to_ptr.hbm [resolvable:$true] %s564
          %570 = dma.vmem_to_hbm [thread:$0]  %s563, 512, %s565, %s532, 128, 128, 8
        $region60: #{tpu_custom_call.1} parent=35 // pred_fallthru
          _
      $region36: #{tpu_custom_call.1} parent=5 // pred_fallthru
        _
      %p571 = scmp.le.s32.totalorder 2, %s25
      // Predicated region
      $region61: #{tpu_custom_call.1} parent=5 // pred_check
        %p572 = pneg %p571
      $region62: #{tpu_custom_call.1} parent=5 // pred_check_branch
        %574 = sbr.rel (%p572) target = $region64
      $region63: #{tpu_custom_call.1} parent=5 // pred_region
        %s575 = ssub.s32 %s25, 2
        // Predicated region
        $region65: #{tpu_custom_call.1} parent=63 // pred_check
          %p576 = pneg %p153
        $region66: #{tpu_custom_call.1} parent=63 // pred_check_branch
          %578 = sbr.rel (%p576) target = $region68
        $region67: #{tpu_custom_call.1} parent=63 // pred_region
          %s579 = sand.u32 %s138, 1
          %s580 = scalar_lea.sflag [#allocation4], %s579
          %s581 = sand.u32 %s138, 1
          %s582 = smul.addr %s581, 96
          %s583 = scalar_lea.vmem [#allocation10], %s582
          %585 = dma.done %s580, 1536
        $region68: #{tpu_custom_call.1} parent=63 // pred_fallthru
          _
        // Predicated region
        $region69: #{tpu_custom_call.1} parent=63 // pred_check
          %p586 = pneg %p179
        $region70: #{tpu_custom_call.1} parent=63 // pred_check_branch
          %588 = sbr.rel (%p586) target = $region72
        $region71: #{tpu_custom_call.1} parent=63 // pred_region
          %s589 = sand.u32 %s164, 1
          %s590 = scalar_lea.sflag [#allocation12], %s589
          %s591 = sand.u32 %s164, 1
          %s592 = smul.addr %s591, 32
          %s593 = scalar_lea.vmem [#allocation11], %s592
          %595 = dma.done %s590, 512
        $region72: #{tpu_custom_call.1} parent=63 // pred_fallthru
          _
      $region64: #{tpu_custom_call.1} parent=5 // pred_fallthru
        _
    $region6: #{tpu_custom_call.1} parent=1 // loop_footer
      %s29 = sadd.s32 1, %s25
    $region7: #{tpu_custom_call.1} parent=1 // loop_footer_branch
      %24 = sbr.rel target = $region3
    $region8: #{tpu_custom_call.1} parent=1 // loop_exit
      _
    %596 = vsyncpa [#allocation3], 1
    %s597 = scalar_lea.sflag [#allocation3], 1
    %598 = vsyncpa %s597, 1
    %599 = vsyncpa [#allocation6], 1
    %s600 = scalar_lea.sflag [#allocation6], 1
    %601 = vsyncpa %s600, 1
    %602 = vsyncpa [#allocation9], 1
    %603 = vsyncpa [#allocation4], 1
    %s604 = scalar_lea.sflag [#allocation4], 1
    %605 = vsyncpa %s604, 1
    %606 = vsyncpa [#allocation12], 1
    %s607 = scalar_lea.sflag [#allocation12], 1
    %608 = vsyncpa %s607, 1

</llo_original>
